<compile_context>
chip_gen: v7x
topology: tpu7x:2x2x1
jax: 0.10.0
libtpu: 0.0.40
codegen_flags: <defaults>
</compile_context>

<pallas_src>
import jax
import jax.numpy as jnp
from jax import lax
from jax.experimental import pallas as pl
from jax.experimental.pallas import tpu as pltpu


def _gru_kernel(x_ref, wi_ref, wh_ref, bi_ref, bhn_ref, out_ref, hn_ref):
    # x_ref:   (T*B, I) bf16, time-major rows (t major, b minor)
    # wi_ref:  (I, 3H)  bf16 fused input weights  [r | z | n] (PyTorch order)
    # wh_ref:  (H, 3H)  bf16 fused hidden weights [r | z | n]
    # bi_ref:  (1, 3H)  f32  = b_ih + [b_hh_r, b_hh_z, 0]   (r/z hidden bias folded)
    # bhn_ref: (1, H)   f32  = b_hh_n  (must stay inside r * (...))
    # out_ref: (T, B, H) f32 per-step hidden states (time-major)
    # hn_ref:  (1, B, H) f32 final hidden state
    T, B, H = out_ref.shape

    wh = wh_ref[...]                                       # loop-invariant bf16 RHS
    bhn = jnp.broadcast_to(bhn_ref[...], (B, H))           # hoisted broadcast

    # All T input-side gate projections as ONE MXU push (M=T*B), off the
    # serial critical path; bias added once to the whole (T*B, 3H) result.
    gi_all = jnp.dot(x_ref[...], wi_ref[...],
                     preferred_element_type=jnp.float32) + bi_ref[...]
    gi_list = [gi_all[t * B:(t + 1) * B, :] for t in range(T)]   # static slices

    # Serial recurrence, fully unrolled; h stays in vregs, f32 elementwise.
    h = jnp.zeros((B, H), jnp.float32)
    hs = []
    for t in range(T):
        gi = gi_list[t]                                                   # (B, 3H)
        gh = jnp.dot(h.astype(jnp.bfloat16), wh,
                     preferred_element_type=jnp.float32)                  # (B, 3H)
        # PyTorch GRU (gate order r, z, n):
        #   r = sigmoid(i_r + h_r + b_ir + b_hr)   (biases pre-folded into gi)
        #   z = sigmoid(i_z + h_z + b_iz + b_hz)
        #   n = tanh(i_n + b_in + r * (h_n + b_hn))
        #   h' = (1 - z) * n + z * h
        s = gi + gh                                                       # one add
        rz = jax.nn.sigmoid(s[:, :2 * H])                                 # fused r/z
        r = rz[:, :H]
        z = rz[:, H:]
        n = jnp.tanh(gi[:, 2 * H:] + r * (gh[:, 2 * H:] + bhn))
        h = (1.0 - z) * n + z * h
        hs.append(h)

    # Single batched writeback (stack is off the dependency chain).
    out_ref[...] = jnp.stack(hs, axis=0).astype(out_ref.dtype)
    hn_ref[0] = h.astype(hn_ref.dtype)


def gru_forward_pallas(x_btc, w_ih, w_hh, b_ih, b_hh):
    """x_btc: (B, T, I) batch-first f32. Returns (output (B,T,H), hidden (1,B,H))."""
    B, T, I = x_btc.shape
    H = w_hh.shape[1]

    # Fused, pre-transposed weights as bf16 MXU operands.
    wi = jnp.transpose(w_ih).astype(jnp.bfloat16)        # (I, 3H)
    wh = jnp.transpose(w_hh).astype(jnp.bfloat16)        # (H, 3H)
    # Fold hidden-side r/z biases into the input-side bias (f32).
    bi = (b_ih + jnp.concatenate(
        [b_hh[:2 * H], jnp.zeros((H,), b_hh.dtype)]))[None, :]            # (1, 3H)
    bhn = b_hh[2 * H:][None, :]                                           # (1, H)

    # Time-major, rows collapsed for the single merged input GEMM.
    x2d = jnp.transpose(x_btc, (1, 0, 2)).reshape(T * B, I).astype(jnp.bfloat16)

    vmem = pl.BlockSpec(memory_space=pltpu.MemorySpace.VMEM)
    out_tm, h_n = pl.pallas_call(
        _gru_kernel,
        out_shape=(jax.ShapeDtypeStruct((T, B, H), jnp.float32),
                   jax.ShapeDtypeStruct((1, B, H), jnp.float32)),
        in_specs=[vmem] * 5,
        out_specs=(vmem, vmem),
    )(x2d, wi, wh, bi, bhn)

    output = jnp.transpose(out_tm, (1, 0, 2))  # back to batch-first (B, T, H)
    return output, h_n


@jax.jit
def encoder_rnn_forward(input_var, params):
    """EncoderRNN.forward with goals=None, init_state=None, variable_lengths=False,
    input_dropout in eval mode (identity). Returns (output, hidden)."""
    # TODO(synk): variable_lengths (pack/pad) and goals-concat paths are not exercised here.
    return gru_forward_pallas(input_var, params["w_ih"], params["w_hh"],
                              params["b_ih"], params["b_hh"])


def _gru_reference(x_btc, w_ih, w_hh, b_ih, b_hh, matmul_dtype=jnp.float32):
    """Pure-JAX reference (lax.scan). matmul_dtype=bf16 mirrors the kernel's MXU
    operand precision (f32 accumulation, f32 elementwise) for tight checking."""
    B, T, I = x_btc.shape
    H = w_hh.shape[1]
    x_tbc = jnp.transpose(x_btc, (1, 0, 2))
    wi_t = jnp.transpose(w_ih).astype(matmul_dtype)
    wh_t = jnp.transpose(w_hh).astype(matmul_dtype)

    def step(h, x_t):
        gi = jnp.dot(x_t.astype(matmul_dtype), wi_t,
                     preferred_element_type=jnp.float32) + b_ih
        gh = jnp.dot(h.astype(matmul_dtype), wh_t,
                     preferred_element_type=jnp.float32) + b_hh
        i_r, i_z, i_n = gi[:, :H], gi[:, H:2 * H], gi[:, 2 * H:]
        h_r, h_z, h_n = gh[:, :H], gh[:, H:2 * H], gh[:, 2 * H:]
        r = jax.nn.sigmoid(i_r + h_r)
        z = jax.nn.sigmoid(i_z + h_z)
        n = jnp.tanh(i_n + r * h_n)
        h_new = (1.0 - z) * n + z * h
        return h_new, h_new

    h0 = jnp.zeros((B, H), jnp.float32)
    h_last, ys = lax.scan(step, h0, x_tbc)
    return jnp.transpose(ys, (1, 0, 2)), h_last[None]


if __name__ == "__main__":
    # Module config: rnn_cell='gru', input_size=16, hidden_size=32, num_layers=1,
    # bidirectional=False, input_dropout_p=0.0, output_dropout_p=0.0,
    # variable_lengths=False.
    B, T, I, H = 4, 8, 16, 32

    key = jax.random.PRNGKey(0)
    k_x, k1, k2, k3, k4 = jax.random.split(key, 5)
    bound = 1.0 / jnp.sqrt(H)
    params = {
        "w_ih": jax.random.uniform(k1, (3 * H, I), jnp.float32, -bound, bound),
        "w_hh": jax.random.uniform(k2, (3 * H, H), jnp.float32, -bound, bound),
        "b_ih": jax.random.uniform(k3, (3 * H,), jnp.float32, -bound, bound),
        "b_hh": jax.random.uniform(k4, (3 * H,), jnp.float32, -bound, bound),
    }
    input_var = jax.random.normal(k_x, (B, T, I), jnp.float32)

    output, hidden = encoder_rnn_forward(input_var, params)
    output = jax.block_until_ready(output)
    hidden = jax.block_until_ready(hidden)
    assert output.shape == (B, T, H) and hidden.shape == (1, B, H)

    # Tight check against a reference using the same bf16 MXU operand precision.
    ref_out_bf, ref_hid_bf = _gru_reference(
        input_var, params["w_ih"], params["w_hh"], params["b_ih"], params["b_hh"],
        matmul_dtype=jnp.bfloat16)
    assert jnp.allclose(output, ref_out_bf, atol=1e-3, rtol=1e-3)
    assert jnp.allclose(hidden, ref_hid_bf, atol=1e-3, rtol=1e-3)

    # Looser sanity check against the full-f32 PyTorch-semantics reference
    # (deviation comes only from bf16 MXU operands).
    ref_out, ref_hid = _gru_reference(
        input_var, params["w_ih"], params["w_hh"], params["b_ih"], params["b_hh"],
        matmul_dtype=jnp.float32)
    assert jnp.allclose(output, ref_out, atol=3e-2, rtol=3e-2)
    assert jnp.allclose(hidden, ref_hid, atol=3e-2, rtol=3e-2)

    print("KERNEL_OK")
</pallas_src>

<mosaic_0001>
module attributes {stable_mosaic.version = 11 : i64} {
  func.func @_gru_kernel(%arg0: memref<32x16xbf16, #tpu.memory_space<vmem>>, %arg1: memref<16x96xbf16, #tpu.memory_space<vmem>>, %arg2: memref<32x96xbf16, #tpu.memory_space<vmem>>, %arg3: memref<1x96xf32, #tpu.memory_space<vmem>>, %arg4: memref<1x32xf32, #tpu.memory_space<vmem>>, %arg5: memref<8x4x32xf32, #tpu.memory_space<vmem>>, %arg6: memref<1x4x32xf32, #tpu.memory_space<vmem>>) attributes {dimension_semantics = [], scalar_prefetch = 0 : i64, scratch_operands = 0 : i64, tpu.core_type = #tpu.core_type<tc>} {
    %c0 = arith.constant 0 : index
    %c0_0 = arith.constant 0 : index
    %0 = vector.load %arg2[%c0, %c0_0] : memref<32x96xbf16, #tpu.memory_space<vmem>>, vector<32x96xbf16>
    %c0_1 = arith.constant 0 : index
    %c0_2 = arith.constant 0 : index
    %1 = vector.load %arg4[%c0_1, %c0_2] : memref<1x32xf32, #tpu.memory_space<vmem>>, vector<1x32xf32>
    %2 = vector.shape_cast %1 : vector<1x32xf32> to vector<1x32xf32>
    %3 = vector.broadcast %2 : vector<1x32xf32> to vector<4x32xf32>
    %c0_3 = arith.constant 0 : index
    %c0_4 = arith.constant 0 : index
    %4 = vector.load %arg0[%c0_3, %c0_4] : memref<32x16xbf16, #tpu.memory_space<vmem>>, vector<32x16xbf16>
    %c0_5 = arith.constant 0 : index
    %c0_6 = arith.constant 0 : index
    %5 = vector.load %arg1[%c0_5, %c0_6] : memref<16x96xbf16, #tpu.memory_space<vmem>>, vector<16x96xbf16>
    %cst = arith.constant dense<0.000000e+00> : vector<32x96xf32>
    %6 = tpu.matmul %4, %5, %cst {dimension_numbers = #tpu.dot_dimension_numbers<[1], [0], [0], [1], [0, 0, 1, 1], [], []>} : vector<32x16xbf16>, vector<16x96xbf16>, vector<32x96xf32> -> vector<32x96xf32>
    %c0_7 = arith.constant 0 : index
    %c0_8 = arith.constant 0 : index
    %7 = vector.load %arg3[%c0_7, %c0_8] : memref<1x96xf32, #tpu.memory_space<vmem>>, vector<1x96xf32>
    %8 = vector.broadcast %7 : vector<1x96xf32> to vector<32x96xf32>
    %9 = arith.addf %6, %8 : vector<32x96xf32>
    %10 = vector.extract_strided_slice %9 {offsets = [0, 0], sizes = [4, 96], strides = [1, 1]} : vector<32x96xf32> to vector<4x96xf32>
    %11 = vector.extract_strided_slice %9 {offsets = [4, 0], sizes = [4, 96], strides = [1, 1]} : vector<32x96xf32> to vector<4x96xf32>
    %12 = vector.extract_strided_slice %9 {offsets = [8, 0], sizes = [4, 96], strides = [1, 1]} : vector<32x96xf32> to vector<4x96xf32>
    %13 = vector.extract_strided_slice %9 {offsets = [12, 0], sizes = [4, 96], strides = [1, 1]} : vector<32x96xf32> to vector<4x96xf32>
    %14 = vector.extract_strided_slice %9 {offsets = [16, 0], sizes = [4, 96], strides = [1, 1]} : vector<32x96xf32> to vector<4x96xf32>
    %15 = vector.extract_strided_slice %9 {offsets = [20, 0], sizes = [4, 96], strides = [1, 1]} : vector<32x96xf32> to vector<4x96xf32>
    %16 = vector.extract_strided_slice %9 {offsets = [24, 0], sizes = [4, 96], strides = [1, 1]} : vector<32x96xf32> to vector<4x96xf32>
    %17 = vector.extract_strided_slice %9 {offsets = [28, 0], sizes = [4, 96], strides = [1, 1]} : vector<32x96xf32> to vector<4x96xf32>
    %cst_9 = arith.constant 0.000000e+00 : f32
    %18 = vector.broadcast %cst_9 : f32 to vector<4x32xf32>
    %19 = arith.truncf %18 : vector<4x32xf32> to vector<4x32xbf16>
    %cst_10 = arith.constant dense<0.000000e+00> : vector<4x96xf32>
    %20 = tpu.matmul %19, %0, %cst_10 {dimension_numbers = #tpu.dot_dimension_numbers<[1], [0], [0], [1], [0, 0, 1, 1], [], []>} : vector<4x32xbf16>, vector<32x96xbf16>, vector<4x96xf32> -> vector<4x96xf32>
    %21 = arith.addf %10, %20 : vector<4x96xf32>
    %22 = vector.extract_strided_slice %21 {offsets = [0, 0], sizes = [4, 64], strides = [1, 1]} : vector<4x96xf32> to vector<4x64xf32>
    %23 = arith.negf %22 : vector<4x64xf32>
    %24 = math.exp %23 : vector<4x64xf32>
    %cst_11 = arith.constant 1.000000e+00 : f32
    %25 = vector.broadcast %cst_11 : f32 to vector<4x64xf32>
    %26 = arith.addf %25, %24 : vector<4x64xf32>
    %27 = arith.divf %25, %26 : vector<4x64xf32>
    %28 = vector.extract_strided_slice %27 {offsets = [0, 0], sizes = [4, 32], strides = [1, 1]} : vector<4x64xf32> to vector<4x32xf32>
    %29 = vector.extract_strided_slice %27 {offsets = [0, 32], sizes = [4, 32], strides = [1, 1]} : vector<4x64xf32> to vector<4x32xf32>
    %30 = vector.extract_strided_slice %10 {offsets = [0, 64], sizes = [4, 32], strides = [1, 1]} : vector<4x96xf32> to vector<4x32xf32>
    %31 = vector.extract_strided_slice %20 {offsets = [0, 64], sizes = [4, 32], strides = [1, 1]} : vector<4x96xf32> to vector<4x32xf32>
    %32 = arith.addf %31, %3 : vector<4x32xf32>
    %33 = arith.mulf %28, %32 : vector<4x32xf32>
    %34 = arith.addf %30, %33 : vector<4x32xf32>
    %35 = math.tanh %34 : vector<4x32xf32>
    %cst_12 = arith.constant 1.000000e+00 : f32
    %36 = vector.broadcast %cst_12 : f32 to vector<4x32xf32>
    %37 = arith.subf %36, %29 : vector<4x32xf32>
    %38 = arith.mulf %37, %35 : vector<4x32xf32>
    %39 = arith.mulf %29, %18 : vector<4x32xf32>
    %40 = arith.addf %38, %39 : vector<4x32xf32>
    %41 = arith.truncf %40 : vector<4x32xf32> to vector<4x32xbf16>
    %cst_13 = arith.constant dense<0.000000e+00> : vector<4x96xf32>
    %42 = tpu.matmul %41, %0, %cst_13 {dimension_numbers = #tpu.dot_dimension_numbers<[1], [0], [0], [1], [0, 0, 1, 1], [], []>} : vector<4x32xbf16>, vector<32x96xbf16>, vector<4x96xf32> -> vector<4x96xf32>
    %43 = arith.addf %11, %42 : vector<4x96xf32>
    %44 = vector.extract_strided_slice %43 {offsets = [0, 0], sizes = [4, 64], strides = [1, 1]} : vector<4x96xf32> to vector<4x64xf32>
    %45 = arith.negf %44 : vector<4x64xf32>
    %46 = math.exp %45 : vector<4x64xf32>
    %cst_14 = arith.constant 1.000000e+00 : f32
    %47 = vector.broadcast %cst_14 : f32 to vector<4x64xf32>
    %48 = arith.addf %47, %46 : vector<4x64xf32>
    %49 = arith.divf %47, %48 : vector<4x64xf32>
    %50 = vector.extract_strided_slice %49 {offsets = [0, 0], sizes = [4, 32], strides = [1, 1]} : vector<4x64xf32> to vector<4x32xf32>
    %51 = vector.extract_strided_slice %49 {offsets = [0, 32], sizes = [4, 32], strides = [1, 1]} : vector<4x64xf32> to vector<4x32xf32>
    %52 = vector.extract_strided_slice %11 {offsets = [0, 64], sizes = [4, 32], strides = [1, 1]} : vector<4x96xf32> to vector<4x32xf32>
    %53 = vector.extract_strided_slice %42 {offsets = [0, 64], sizes = [4, 32], strides = [1, 1]} : vector<4x96xf32> to vector<4x32xf32>
    %54 = arith.addf %53, %3 : vector<4x32xf32>
    %55 = arith.mulf %50, %54 : vector<4x32xf32>
    %56 = arith.addf %52, %55 : vector<4x32xf32>
    %57 = math.tanh %56 : vector<4x32xf32>
    %cst_15 = arith.constant 1.000000e+00 : f32
    %58 = vector.broadcast %cst_15 : f32 to vector<4x32xf32>
    %59 = arith.subf %58, %51 : vector<4x32xf32>
    %60 = arith.mulf %59, %57 : vector<4x32xf32>
    %61 = arith.mulf %51, %40 : vector<4x32xf32>
    %62 = arith.addf %60, %61 : vector<4x32xf32>
    %63 = arith.truncf %62 : vector<4x32xf32> to vector<4x32xbf16>
    %cst_16 = arith.constant dense<0.000000e+00> : vector<4x96xf32>
    %64 = tpu.matmul %63, %0, %cst_16 {dimension_numbers = #tpu.dot_dimension_numbers<[1], [0], [0], [1], [0, 0, 1, 1], [], []>} : vector<4x32xbf16>, vector<32x96xbf16>, vector<4x96xf32> -> vector<4x96xf32>
    %65 = arith.addf %12, %64 : vector<4x96xf32>
    %66 = vector.extract_strided_slice %65 {offsets = [0, 0], sizes = [4, 64], strides = [1, 1]} : vector<4x96xf32> to vector<4x64xf32>
    %67 = arith.negf %66 : vector<4x64xf32>
    %68 = math.exp %67 : vector<4x64xf32>
    %cst_17 = arith.constant 1.000000e+00 : f32
    %69 = vector.broadcast %cst_17 : f32 to vector<4x64xf32>
    %70 = arith.addf %69, %68 : vector<4x64xf32>
    %71 = arith.divf %69, %70 : vector<4x64xf32>
    %72 = vector.extract_strided_slice %71 {offsets = [0, 0], sizes = [4, 32], strides = [1, 1]} : vector<4x64xf32> to vector<4x32xf32>
    %73 = vector.extract_strided_slice %71 {offsets = [0, 32], sizes = [4, 32], strides = [1, 1]} : vector<4x64xf32> to vector<4x32xf32>
    %74 = vector.extract_strided_slice %12 {offsets = [0, 64], sizes = [4, 32], strides = [1, 1]} : vector<4x96xf32> to vector<4x32xf32>
    %75 = vector.extract_strided_slice %64 {offsets = [0, 64], sizes = [4, 32], strides = [1, 1]} : vector<4x96xf32> to vector<4x32xf32>
    %76 = arith.addf %75, %3 : vector<4x32xf32>
    %77 = arith.mulf %72, %76 : vector<4x32xf32>
    %78 = arith.addf %74, %77 : vector<4x32xf32>
    %79 = math.tanh %78 : vector<4x32xf32>
    %cst_18 = arith.constant 1.000000e+00 : f32
    %80 = vector.broadcast %cst_18 : f32 to vector<4x32xf32>
    %81 = arith.subf %80, %73 : vector<4x32xf32>
    %82 = arith.mulf %81, %79 : vector<4x32xf32>
    %83 = arith.mulf %73, %62 : vector<4x32xf32>
    %84 = arith.addf %82, %83 : vector<4x32xf32>
    %85 = arith.truncf %84 : vector<4x32xf32> to vector<4x32xbf16>
    %cst_19 = arith.constant dense<0.000000e+00> : vector<4x96xf32>
    %86 = tpu.matmul %85, %0, %cst_19 {dimension_numbers = #tpu.dot_dimension_numbers<[1], [0], [0], [1], [0, 0, 1, 1], [], []>} : vector<4x32xbf16>, vector<32x96xbf16>, vector<4x96xf32> -> vector<4x96xf32>
    %87 = arith.addf %13, %86 : vector<4x96xf32>
    %88 = vector.extract_strided_slice %87 {offsets = [0, 0], sizes = [4, 64], strides = [1, 1]} : vector<4x96xf32> to vector<4x64xf32>
    %89 = arith.negf %88 : vector<4x64xf32>
    %90 = math.exp %89 : vector<4x64xf32>
    %cst_20 = arith.constant 1.000000e+00 : f32
    %91 = vector.broadcast %cst_20 : f32 to vector<4x64xf32>
    %92 = arith.addf %91, %90 : vector<4x64xf32>
    %93 = arith.divf %91, %92 : vector<4x64xf32>
    %94 = vector.extract_strided_slice %93 {offsets = [0, 0], sizes = [4, 32], strides = [1, 1]} : vector<4x64xf32> to vector<4x32xf32>
    %95 = vector.extract_strided_slice %93 {offsets = [0, 32], sizes = [4, 32], strides = [1, 1]} : vector<4x64xf32> to vector<4x32xf32>
    %96 = vector.extract_strided_slice %13 {offsets = [0, 64], sizes = [4, 32], strides = [1, 1]} : vector<4x96xf32> to vector<4x32xf32>
    %97 = vector.extract_strided_slice %86 {offsets = [0, 64], sizes = [4, 32], strides = [1, 1]} : vector<4x96xf32> to vector<4x32xf32>
    %98 = arith.addf %97, %3 : vector<4x32xf32>
    %99 = arith.mulf %94, %98 : vector<4x32xf32>
    %100 = arith.addf %96, %99 : vector<4x32xf32>
    %101 = math.tanh %100 : vector<4x32xf32>
    %cst_21 = arith.constant 1.000000e+00 : f32
    %102 = vector.broadcast %cst_21 : f32 to vector<4x32xf32>
    %103 = arith.subf %102, %95 : vector<4x32xf32>
    %104 = arith.mulf %103, %101 : vector<4x32xf32>
    %105 = arith.mulf %95, %84 : vector<4x32xf32>
    %106 = arith.addf %104, %105 : vector<4x32xf32>
    %107 = arith.truncf %106 : vector<4x32xf32> to vector<4x32xbf16>
    %cst_22 = arith.constant dense<0.000000e+00> : vector<4x96xf32>
    %108 = tpu.matmul %107, %0, %cst_22 {dimension_numbers = #tpu.dot_dimension_numbers<[1], [0], [0], [1], [0, 0, 1, 1], [], []>} : vector<4x32xbf16>, vector<32x96xbf16>, vector<4x96xf32> -> vector<4x96xf32>
    %109 = arith.addf %14, %108 : vector<4x96xf32>
    %110 = vector.extract_strided_slice %109 {offsets = [0, 0], sizes = [4, 64], strides = [1, 1]} : vector<4x96xf32> to vector<4x64xf32>
    %111 = arith.negf %110 : vector<4x64xf32>
    %112 = math.exp %111 : vector<4x64xf32>
    %cst_23 = arith.constant 1.000000e+00 : f32
    %113 = vector.broadcast %cst_23 : f32 to vector<4x64xf32>
    %114 = arith.addf %113, %112 : vector<4x64xf32>
    %115 = arith.divf %113, %114 : vector<4x64xf32>
    %116 = vector.extract_strided_slice %115 {offsets = [0, 0], sizes = [4, 32], strides = [1, 1]} : vector<4x64xf32> to vector<4x32xf32>
    %117 = vector.extract_strided_slice %115 {offsets = [0, 32], sizes = [4, 32], strides = [1, 1]} : vector<4x64xf32> to vector<4x32xf32>
    %118 = vector.extract_strided_slice %14 {offsets = [0, 64], sizes = [4, 32], strides = [1, 1]} : vector<4x96xf32> to vector<4x32xf32>
    %119 = vector.extract_strided_slice %108 {offsets = [0, 64], sizes = [4, 32], strides = [1, 1]} : vector<4x96xf32> to vector<4x32xf32>
    %120 = arith.addf %119, %3 : vector<4x32xf32>
    %121 = arith.mulf %116, %120 : vector<4x32xf32>
    %122 = arith.addf %118, %121 : vector<4x32xf32>
    %123 = math.tanh %122 : vector<4x32xf32>
    %cst_24 = arith.constant 1.000000e+00 : f32
    %124 = vector.broadcast %cst_24 : f32 to vector<4x32xf32>
    %125 = arith.subf %124, %117 : vector<4x32xf32>
    %126 = arith.mulf %125, %123 : vector<4x32xf32>
    %127 = arith.mulf %117, %106 : vector<4x32xf32>
    %128 = arith.addf %126, %127 : vector<4x32xf32>
    %129 = arith.truncf %128 : vector<4x32xf32> to vector<4x32xbf16>
    %cst_25 = arith.constant dense<0.000000e+00> : vector<4x96xf32>
    %130 = tpu.matmul %129, %0, %cst_25 {dimension_numbers = #tpu.dot_dimension_numbers<[1], [0], [0], [1], [0, 0, 1, 1], [], []>} : vector<4x32xbf16>, vector<32x96xbf16>, vector<4x96xf32> -> vector<4x96xf32>
    %131 = arith.addf %15, %130 : vector<4x96xf32>
    %132 = vector.extract_strided_slice %131 {offsets = [0, 0], sizes = [4, 64], strides = [1, 1]} : vector<4x96xf32> to vector<4x64xf32>
    %133 = arith.negf %132 : vector<4x64xf32>
    %134 = math.exp %133 : vector<4x64xf32>
    %cst_26 = arith.constant 1.000000e+00 : f32
    %135 = vector.broadcast %cst_26 : f32 to vector<4x64xf32>
    %136 = arith.addf %135, %134 : vector<4x64xf32>
    %137 = arith.divf %135, %136 : vector<4x64xf32>
    %138 = vector.extract_strided_slice %137 {offsets = [0, 0], sizes = [4, 32], strides = [1, 1]} : vector<4x64xf32> to vector<4x32xf32>
    %139 = vector.extract_strided_slice %137 {offsets = [0, 32], sizes = [4, 32], strides = [1, 1]} : vector<4x64xf32> to vector<4x32xf32>
    %140 = vector.extract_strided_slice %15 {offsets = [0, 64], sizes = [4, 32], strides = [1, 1]} : vector<4x96xf32> to vector<4x32xf32>
    %141 = vector.extract_strided_slice %130 {offsets = [0, 64], sizes = [4, 32], strides = [1, 1]} : vector<4x96xf32> to vector<4x32xf32>
    %142 = arith.addf %141, %3 : vector<4x32xf32>
    %143 = arith.mulf %138, %142 : vector<4x32xf32>
    %144 = arith.addf %140, %143 : vector<4x32xf32>
    %145 = math.tanh %144 : vector<4x32xf32>
    %cst_27 = arith.constant 1.000000e+00 : f32
    %146 = vector.broadcast %cst_27 : f32 to vector<4x32xf32>
    %147 = arith.subf %146, %139 : vector<4x32xf32>
    %148 = arith.mulf %147, %145 : vector<4x32xf32>
    %149 = arith.mulf %139, %128 : vector<4x32xf32>
    %150 = arith.addf %148, %149 : vector<4x32xf32>
    %151 = arith.truncf %150 : vector<4x32xf32> to vector<4x32xbf16>
    %cst_28 = arith.constant dense<0.000000e+00> : vector<4x96xf32>
    %152 = tpu.matmul %151, %0, %cst_28 {dimension_numbers = #tpu.dot_dimension_numbers<[1], [0], [0], [1], [0, 0, 1, 1], [], []>} : vector<4x32xbf16>, vector<32x96xbf16>, vector<4x96xf32> -> vector<4x96xf32>
    %153 = arith.addf %16, %152 : vector<4x96xf32>
    %154 = vector.extract_strided_slice %153 {offsets = [0, 0], sizes = [4, 64], strides = [1, 1]} : vector<4x96xf32> to vector<4x64xf32>
    %155 = arith.negf %154 : vector<4x64xf32>
    %156 = math.exp %155 : vector<4x64xf32>
    %cst_29 = arith.constant 1.000000e+00 : f32
    %157 = vector.broadcast %cst_29 : f32 to vector<4x64xf32>
    %158 = arith.addf %157, %156 : vector<4x64xf32>
    %159 = arith.divf %157, %158 : vector<4x64xf32>
    %160 = vector.extract_strided_slice %159 {offsets = [0, 0], sizes = [4, 32], strides = [1, 1]} : vector<4x64xf32> to vector<4x32xf32>
    %161 = vector.extract_strided_slice %159 {offsets = [0, 32], sizes = [4, 32], strides = [1, 1]} : vector<4x64xf32> to vector<4x32xf32>
    %162 = vector.extract_strided_slice %16 {offsets = [0, 64], sizes = [4, 32], strides = [1, 1]} : vector<4x96xf32> to vector<4x32xf32>
    %163 = vector.extract_strided_slice %152 {offsets = [0, 64], sizes = [4, 32], strides = [1, 1]} : vector<4x96xf32> to vector<4x32xf32>
    %164 = arith.addf %163, %3 : vector<4x32xf32>
    %165 = arith.mulf %160, %164 : vector<4x32xf32>
    %166 = arith.addf %162, %165 : vector<4x32xf32>
    %167 = math.tanh %166 : vector<4x32xf32>
    %cst_30 = arith.constant 1.000000e+00 : f32
    %168 = vector.broadcast %cst_30 : f32 to vector<4x32xf32>
    %169 = arith.subf %168, %161 : vector<4x32xf32>
    %170 = arith.mulf %169, %167 : vector<4x32xf32>
    %171 = arith.mulf %161, %150 : vector<4x32xf32>
    %172 = arith.addf %170, %171 : vector<4x32xf32>
    %173 = arith.truncf %172 : vector<4x32xf32> to vector<4x32xbf16>
    %cst_31 = arith.constant dense<0.000000e+00> : vector<4x96xf32>
    %174 = tpu.matmul %173, %0, %cst_31 {dimension_numbers = #tpu.dot_dimension_numbers<[1], [0], [0], [1], [0, 0, 1, 1], [], []>} : vector<4x32xbf16>, vector<32x96xbf16>, vector<4x96xf32> -> vector<4x96xf32>
    %175 = arith.addf %17, %174 : vector<4x96xf32>
    %176 = vector.extract_strided_slice %175 {offsets = [0, 0], sizes = [4, 64], strides = [1, 1]} : vector<4x96xf32> to vector<4x64xf32>
    %177 = arith.negf %176 : vector<4x64xf32>
    %178 = math.exp %177 : vector<4x64xf32>
    %cst_32 = arith.constant 1.000000e+00 : f32
    %179 = vector.broadcast %cst_32 : f32 to vector<4x64xf32>
    %180 = arith.addf %179, %178 : vector<4x64xf32>
    %181 = arith.divf %179, %180 : vector<4x64xf32>
    %182 = vector.extract_strided_slice %181 {offsets = [0, 0], sizes = [4, 32], strides = [1, 1]} : vector<4x64xf32> to vector<4x32xf32>
    %183 = vector.extract_strided_slice %181 {offsets = [0, 32], sizes = [4, 32], strides = [1, 1]} : vector<4x64xf32> to vector<4x32xf32>
    %184 = vector.extract_strided_slice %17 {offsets = [0, 64], sizes = [4, 32], strides = [1, 1]} : vector<4x96xf32> to vector<4x32xf32>
    %185 = vector.extract_strided_slice %174 {offsets = [0, 64], sizes = [4, 32], strides = [1, 1]} : vector<4x96xf32> to vector<4x32xf32>
    %186 = arith.addf %185, %3 : vector<4x32xf32>
    %187 = arith.mulf %182, %186 : vector<4x32xf32>
    %188 = arith.addf %184, %187 : vector<4x32xf32>
    %189 = math.tanh %188 : vector<4x32xf32>
    %cst_33 = arith.constant 1.000000e+00 : f32
    %190 = vector.broadcast %cst_33 : f32 to vector<4x32xf32>
    %191 = arith.subf %190, %183 : vector<4x32xf32>
    %192 = arith.mulf %191, %189 : vector<4x32xf32>
    %193 = arith.mulf %183, %172 : vector<4x32xf32>
    %194 = arith.addf %192, %193 : vector<4x32xf32>
    %195 = vector.shape_cast %40 : vector<4x32xf32> to vector<1x4x32xf32>
    %196 = vector.shape_cast %62 : vector<4x32xf32> to vector<1x4x32xf32>
    %197 = vector.shape_cast %84 : vector<4x32xf32> to vector<1x4x32xf32>
    %198 = vector.shape_cast %106 : vector<4x32xf32> to vector<1x4x32xf32>
    %199 = vector.shape_cast %128 : vector<4x32xf32> to vector<1x4x32xf32>
    %200 = vector.shape_cast %150 : vector<4x32xf32> to vector<1x4x32xf32>
    %201 = vector.shape_cast %172 : vector<4x32xf32> to vector<1x4x32xf32>
    %202 = vector.shape_cast %194 : vector<4x32xf32> to vector<1x4x32xf32>
    %203 = tpu.concatenate %195, %196, %197, %198, %199, %200, %201, %202 in 0 : vector<1x4x32xf32>, vector<1x4x32xf32>, vector<1x4x32xf32>, vector<1x4x32xf32>, vector<1x4x32xf32>, vector<1x4x32xf32>, vector<1x4x32xf32>, vector<1x4x32xf32> -> vector<8x4x32xf32>
    %c0_34 = arith.constant 0 : index
    %c0_35 = arith.constant 0 : index
    %c0_36 = arith.constant 0 : index
    %204 = vector.load %arg5[%c0_34, %c0_35, %c0_36] : memref<8x4x32xf32, #tpu.memory_space<vmem>>, vector<8x4x32xf32>
    tpu.vector_store %arg5[%c0_34, %c0_35, %c0_36], %203 {strides = array<i32>} : memref<8x4x32xf32, #tpu.memory_space<vmem>>, vector<8x4x32xf32>,
    %c0_37 = arith.constant 0 : index
    %c0_38 = arith.constant 0 : index
    %c0_39 = arith.constant 0 : index
    %205 = vector.load %arg6[%c0_37, %c0_38, %c0_39] : memref<1x4x32xf32, #tpu.memory_space<vmem>>, vector<1x4x32xf32>
    %206 = vector.shape_cast %205 : vector<1x4x32xf32> to vector<4x32xf32>
    %207 = vector.shape_cast %194 : vector<4x32xf32> to vector<1x4x32xf32>
    tpu.vector_store %arg6[%c0_37, %c0_38, %c0_39], %207 {strides = array<i32>} : memref<1x4x32xf32, #tpu.memory_space<vmem>>, vector<1x4x32xf32>,
    return
  }
}

</mosaic_0001>

<llo_original>
// kernel: encoder_rnn_forward.1
$region0: #{encoder_rnn_forward.1}
  #allocation0 [shape = 'u32[]', space=smem, size = 0x4, offset = 0x4, fixed_abs, tag = 'smem constant byte address 0x4 - core index']
  #allocation1 [shape = 'u32[144,128]{1,0:T(1,128)}', space=vmem, size = 0x12000, scoped, tag = 'internal scratch']
  %s0 = inlined_call_operand.vmem [shape: bf16[32,16], index: 0, kind: input, shape index: {}]
  %s1 = inlined_call_operand.vmem [shape: bf16[16,96], index: 1, kind: input, shape index: {}]
  %s2 = inlined_call_operand.vmem [shape: bf16[32,96], index: 2, kind: input, shape index: {}]
  %s3 = inlined_call_operand.vmem [shape: f32[1,96], index: 3, kind: input, shape index: {}]
  %s4 = inlined_call_operand.vmem [shape: f32[1,32], index: 4, kind: input, shape index: {}]
  %s5 = inlined_call_operand.vmem [shape: f32[8,4,32], index: 5, kind: output, shape index: {0}]
  %s6 = inlined_call_operand.hbm [shape: f32[1,4,32], index: 6, kind: output, shape index: {1}]
  %7 = xla_tuple %s5, %s6
  %s8 = sld [smem:[#allocation0]]
  $region38: #{encoder_rnn_forward.1} parent=0
    _
  %s10 = ssub.s32 1, %s8
  %s11 = scalar_select 0, %s10, %s8
  $region1: #{encoder_rnn_forward.1} parent=0
    #allocation2 [shape = 'u8[2048]{0}', space=vmem, size = 0x800, scoped, tag = 'output window, operand 1, single buffered']
    #allocation3 [shape = 's32[1]{0}', space=sflag, size = 0x4, scoped, tag = 'scoped memory for encoder_rnn_forward.1']
    %12 = vsyncpa [#allocation3], 0
    // Predicated region
    $region2: #{encoder_rnn_forward.1} parent=1 // pred_check
      _
    $region3: #{encoder_rnn_forward.1} parent=1 // pred_check_branch
      %14 = sbr.rel (0) target = $region5
    $region4: #{encoder_rnn_forward.1} parent=1 // pred_region
      _
    $region5: #{encoder_rnn_forward.1} parent=1 // pred_fallthru
      _
    // Predicated region
    $region6: #{encoder_rnn_forward.1} parent=1 // pred_check
      _
    $region7: #{encoder_rnn_forward.1} parent=1 // pred_check_branch
      %16 = sbr.rel (0) target = $region9
    $region8: #{encoder_rnn_forward.1} parent=1 // pred_region
      _
    $region9: #{encoder_rnn_forward.1} parent=1 // pred_fallthru
      _
    // Predicated region
    $region10: #{encoder_rnn_forward.1} parent=1 // pred_check
      _
    $region11: #{encoder_rnn_forward.1} parent=1 // pred_check_branch
      %18 = sbr.rel (0) target = $region13
    $region12: #{encoder_rnn_forward.1} parent=1 // pred_region
      _
    $region13: #{encoder_rnn_forward.1} parent=1 // pred_fallthru
      _
    // Predicated region
    $region14: #{encoder_rnn_forward.1} parent=1 // pred_check
      _
    $region15: #{encoder_rnn_forward.1} parent=1 // pred_check_branch
      %20 = sbr.rel (0) target = $region17
    $region16: #{encoder_rnn_forward.1} parent=1 // pred_region
      _
    $region17: #{encoder_rnn_forward.1} parent=1 // pred_fallthru
      _
    // Predicated region
    $region18: #{encoder_rnn_forward.1} parent=1 // pred_check
      _
    $region19: #{encoder_rnn_forward.1} parent=1 // pred_check_branch
      %22 = sbr.rel (0) target = $region21
    $region20: #{encoder_rnn_forward.1} parent=1 // pred_region
      _
    $region21: #{encoder_rnn_forward.1} parent=1 // pred_fallthru
      _
    %v24 = vld [vmem:[%s2] sm:$0xf]
    %v25 = vld [vmem:[%s2 + $0x4] sm:$0xf]
    %v26 = vld [vmem:[%s2 + $0x8] sm:$0xf]
    %v27 = vld [vmem:[%s2 + $0xc] sm:$0xf]
    %v28 = vld [vmem:[%s4] sm:$0x1]
    %v30 = vlaneseq
    %v31 = vshrl.u32 %v30, 7
    %v32 = vsub.s32 0, %v31
    %v33 = vrot.slane %v28, %v32
    %v34 = vld [vmem:[%s0] sm:$0xf]
    %v35 = vld [vmem:[%s0 + $0x4] sm:$0xf]
    %v36 = vld [vmem:[%s0 + $0x8] sm:$0xf]
    %v37 = vld [vmem:[%s0 + $0xc] sm:$0xf]
    %v38 = vld [vmem:[%s1] sm:$0xf]
    %v39 = vld [vmem:[%s1 + $0x4] sm:$0xf]
    %v40 = vld [vmem:[%s3] sm:$0x1]
    %v42 = vlaneseq
    %v43 = vshrl.u32 %v42, 7
    %v44 = vsub.s32 0, %v43
    %v45 = vrot.slane %v40, %v44
    %v51 = vunpack.c.l.b16 %v34
    %v52 = vunpack.c.l.b16 %v35
    %v53 = vunpack.c.l.b16 %v36
    %v54 = vunpack.c.l.b16 %v37
    %v55 = vpack.c.b16 %v52, %v51
    %v56 = vpack.c.b16 %v54, %v53
    %v59 = vunpack.c.l.b16 %v38
    %v60 = vunpack.c.l.b16 %v39
    %v61 = vpack.c.b16 %v60, %v59
    %vm63 = vcmask 130048
    %v65 = vsel %vm63, %v55, 0
    %v68 = vsel %vm63, %v56, 0
    %70 = vmatprep.subr.bf16.mxu0 0
    %71 = vmatpush1.bf16.msra.mxu0 %v61
    %72 = vmatprep.subr.bf16.mxu0 0
    %73 = vmatpush1.bf16.msra.mxu0 0
    %74 = vmatprep.subr.bf16.mxu0 0
    %75 = vmatpush1.bf16.msra.mxu0 0
    %76 = vmatprep.subr.bf16.mxu0 0
    %77 = vmatpush1.bf16.msra.mxu0 0
    %78 = vmatprep.subr.bf16.mxu0 0
    %79 = vmatpush1.bf16.msra.mxu0 0
    %80 = vmatprep.subr.bf16.mxu0 0
    %81 = vmatpush1.bf16.msra.mxu0 0
    %82 = vmatprep.subr.bf16.mxu0 0
    %83 = vmatpush1.bf16.msra.mxu0 0
    %84 = vmatprep.subr.bf16.mxu0 0
    %85 = vmatpush1.bf16.msra.mxu0 0
    %86 = vmatprep.subr.bf16.mxu0 0
    %87 = vmatpush1.bf16.msra.mxu0 0
    %88 = vmatprep.subr.bf16.mxu0 0
    %89 = vmatpush1.bf16.msra.mxu0 0
    %90 = vmatprep.subr.bf16.mxu0 0
    %91 = vmatpush1.bf16.msra.mxu0 0
    %92 = vmatprep.subr.bf16.mxu0 0
    %93 = vmatpush1.bf16.msra.mxu0 0
    %94 = vmatprep.subr.bf16.mxu0 0
    %95 = vmatpush1.bf16.msra.mxu0 0
    %96 = vmatprep.subr.bf16.mxu0 0
    %97 = vmatpush1.bf16.msra.mxu0 0
    %98 = vmatprep.subr.bf16.mxu0 0
    %99 = vmatpush1.bf16.msra.mxu0 0
    %100 = vmatprep.subr.bf16.mxu0 0
    %101 = vmatpush1.bf16.msra.mxu0 0
    %102 = vmatprep.mubr.bf16.mxu0 0
    %103 = vmatmul.mubr.bf16.gmra.mrb[0].mxu0 %v65
    %v104 = vpop.f32.mrb[0].mxu0
    %v105 = vadd.f32 %v45, %v104
    %v106 = vpop.f32.mrb[0].mxu0
    %v107 = vpop.f32.mrb[0].mxu0
    %v108 = vadd.f32 %v45, %v107
    %v109 = vpop.f32.mrb[0].mxu0
    %110 = vmatprep.mubr.bf16.mxu0 0
    %111 = vmatmul.mubr.bf16.gmra.mrb[0].mxu0 %v68
    %v112 = vpop.f32.mrb[0].mxu0
    %v113 = vadd.f32 %v45, %v112
    %v114 = vpop.f32.mrb[0].mxu0
    %v115 = vpop.f32.mrb[0].mxu0
    %v116 = vadd.f32 %v45, %v115
    %v117 = vpop.f32.mrb[0].mxu0
    %118 = vdwg.mxu0
    %v123 = vunpack.c.l.b16 %v24
    %v124 = vunpack.c.l.b16 %v25
    %v125 = vunpack.c.l.b16 %v26
    %v126 = vunpack.c.l.b16 %v27
    %v127 = vpack.c.b16 %v124, %v123
    %v128 = vpack.c.b16 %v126, %v125
    %vm131 = vcmask 261120
    %v133 = vsel %vm131, 0, 0
    %135 = vmatprep.subr.bf16.mxu0 0
    %136 = vmatpush1.bf16.msra.mxu0 %v127
    %137 = vmatprep.subr.bf16.mxu0 0
    %138 = vmatpush1.bf16.msra.mxu0 %v128
    %139 = vmatprep.subr.bf16.mxu0 0
    %140 = vmatpush1.bf16.msra.mxu0 0
    %141 = vmatprep.subr.bf16.mxu0 0
    %142 = vmatpush1.bf16.msra.mxu0 0
    %143 = vmatprep.subr.bf16.mxu0 0
    %144 = vmatpush1.bf16.msra.mxu0 0
    %145 = vmatprep.subr.bf16.mxu0 0
    %146 = vmatpush1.bf16.msra.mxu0 0
    %147 = vmatprep.subr.bf16.mxu0 0
    %148 = vmatpush1.bf16.msra.mxu0 0
    %149 = vmatprep.subr.bf16.mxu0 0
    %150 = vmatpush1.bf16.msra.mxu0 0
    %151 = vmatprep.subr.bf16.mxu0 0
    %152 = vmatpush1.bf16.msra.mxu0 0
    %153 = vmatprep.subr.bf16.mxu0 0
    %154 = vmatpush1.bf16.msra.mxu0 0
    %155 = vmatprep.subr.bf16.mxu0 0
    %156 = vmatpush1.bf16.msra.mxu0 0
    %157 = vmatprep.subr.bf16.mxu0 0
    %158 = vmatpush1.bf16.msra.mxu0 0
    %159 = vmatprep.subr.bf16.mxu0 0
    %160 = vmatpush1.bf16.msra.mxu0 0
    %161 = vmatprep.subr.bf16.mxu0 0
    %162 = vmatpush1.bf16.msra.mxu0 0
    %163 = vmatprep.subr.bf16.mxu0 0
    %164 = vmatpush1.bf16.msra.mxu0 0
    %165 = vmatprep.subr.bf16.mxu0 0
    %166 = vmatpush1.bf16.msra.mxu0 0
    %167 = vmatprep.mubr.bf16.mxu0 0
    %168 = vmatmul.mubr.bf16.gmra.mrb[0].mxu0 %v133
    %v169 = vpop.f32.mrb[0].mxu0
    %v170 = vadd.f32 0.0, %v169
    %v171 = vpop.f32.mrb[0].mxu0
    %v172 = vpop.f32.mrb[0].mxu0
    %v173 = vpop.f32.mrb[0].mxu0
    %174 = vdwg.mxu0
    %v175 = vadd.f32 %v105, %v170
    %v176 = vxor.u32 %v175, 2147483648
    %v177 = vmul.f32 %v176, 1.442695
    %v178 = vpow.pop %v177
    %v179 = vadd.f32 %v178, 1.0
    %v180 = vrcp.pop %v179
    %v181 = vmul.f32 1.0, %v180
    %182 = vrot.lane.b32.xlu0 %v33, 64
    %v183 = vpop.permute.xlu0 %182
    %v185 = vadd.f32 %v170, %v183
    %187 = vrot.lane.b32.xlu0 %v185, 64
    %v188 = vpop.permute.xlu0 %187
    %v190 = vmul.f32 %v181, %v188
    %192 = vrot.lane.b32.xlu0 %v190, 64
    %v193 = vpop.permute.xlu0 %192
    %v195 = vadd.f32 %v105, %v193
    %v196 = vtanh.pop %v195
    %v197 = vsub.f32 1.0, %v181
    %199 = vrot.lane.b32.xlu0 %v196, 96
    %v200 = vpop.permute.xlu0 %199
    %v202 = vmul.f32 %v197, %v200
    %v203 = vmul.f32 %v181, 0.0
    %v204 = vadd.f32 %v202, %v203
    %v205 = vpack.c.bf16 %v204, %v204
    %207 = vrot.lane.b32.xlu0 %v205, 96
    %v208 = vpop.permute.xlu0 %207
    %v210 = vsel %vm131, %v208, 0
    %212 = vmatprep.subr.bf16.mxu0 0
    %213 = vmatpush1.bf16.msra.mxu0 %v127
    %214 = vmatprep.subr.bf16.mxu0 0
    %215 = vmatpush1.bf16.msra.mxu0 %v128
    %216 = vmatprep.subr.bf16.mxu0 0
    %217 = vmatpush1.bf16.msra.mxu0 0
    %218 = vmatprep.subr.bf16.mxu0 0
    %219 = vmatpush1.bf16.msra.mxu0 0
    %220 = vmatprep.subr.bf16.mxu0 0
    %221 = vmatpush1.bf16.msra.mxu0 0
    %222 = vmatprep.subr.bf16.mxu0 0
    %223 = vmatpush1.bf16.msra.mxu0 0
    %224 = vmatprep.subr.bf16.mxu0 0
    %225 = vmatpush1.bf16.msra.mxu0 0
    %226 = vmatprep.subr.bf16.mxu0 0
    %227 = vmatpush1.bf16.msra.mxu0 0
    %228 = vmatprep.subr.bf16.mxu0 0
    %229 = vmatpush1.bf16.msra.mxu0 0
    %230 = vmatprep.subr.bf16.mxu0 0
    %231 = vmatpush1.bf16.msra.mxu0 0
    %232 = vmatprep.subr.bf16.mxu0 0
    %233 = vmatpush1.bf16.msra.mxu0 0
    %234 = vmatprep.subr.bf16.mxu0 0
    %235 = vmatpush1.bf16.msra.mxu0 0
    %236 = vmatprep.subr.bf16.mxu0 0
    %237 = vmatpush1.bf16.msra.mxu0 0
    %238 = vmatprep.subr.bf16.mxu0 0
    %239 = vmatpush1.bf16.msra.mxu0 0
    %240 = vmatprep.subr.bf16.mxu0 0
    %241 = vmatpush1.bf16.msra.mxu0 0
    %242 = vmatprep.subr.bf16.mxu0 0
    %243 = vmatpush1.bf16.msra.mxu0 0
    %244 = vmatprep.mubr.bf16.mxu0 0
    %245 = vmatmul.mubr.bf16.gmra.mrb[0].mxu0 %v210
    %v246 = vpop.f32.mrb[0].mxu0
    %v247 = vadd.f32 0.0, %v246
    %v248 = vpop.f32.mrb[0].mxu0
    %v249 = vpop.f32.mrb[0].mxu0
    %v250 = vpop.f32.mrb[0].mxu0
    %251 = vdwg.mxu0
    %v253 = vrot.slane %v247, 4
    %v255 = vadd.f32 %v105, %v253
    %v256 = vxor.u32 %v255, 2147483648
    %v257 = vmul.f32 %v256, 1.442695
    %v258 = vpow.pop %v257
    %v259 = vadd.f32 %v258, 1.0
    %v260 = vrcp.pop %v259
    %v261 = vmul.f32 1.0, %v260
    %v262 = vadd.f32 %v247, %v183
    %v264 = vrot.slane %v262, 4
    %265 = vrot.lane.b32.xlu0 %v264, 64
    %v266 = vpop.permute.xlu0 %265
    %v268 = vmul.f32 %v261, %v266
    %270 = vrot.lane.b32.xlu0 %v268, 64
    %v271 = vpop.permute.xlu0 %270
    %v273 = vadd.f32 %v105, %v271
    %v274 = vtanh.pop %v273
    %v275 = vsub.f32 1.0, %v261
    %277 = vrot.lane.b32.xlu0 %v274, 96
    %v278 = vpop.permute.xlu0 %277
    %v280 = vmul.f32 %v275, %v278
    %v282 = vrot.slane %v204, 4
    %v284 = vmul.f32 %v261, %v282
    %v285 = vadd.f32 %v280, %v284
    %v286 = vpack.c.bf16 %v285, %v285
    %v288 = vrot.slane %v286, 2
    %289 = vrot.lane.b32.xlu0 %v288, 96
    %v290 = vpop.permute.xlu0 %289
    %v292 = vsel %vm131, %v290, 0
    %294 = vmatprep.subr.bf16.mxu0 0
    %295 = vmatpush1.bf16.msra.mxu0 %v127
    %296 = vmatprep.subr.bf16.mxu0 0
    %297 = vmatpush1.bf16.msra.mxu0 %v128
    %298 = vmatprep.subr.bf16.mxu0 0
    %299 = vmatpush1.bf16.msra.mxu0 0
    %300 = vmatprep.subr.bf16.mxu0 0
    %301 = vmatpush1.bf16.msra.mxu0 0
    %302 = vmatprep.subr.bf16.mxu0 0
    %303 = vmatpush1.bf16.msra.mxu0 0
    %304 = vmatprep.subr.bf16.mxu0 0
    %305 = vmatpush1.bf16.msra.mxu0 0
    %306 = vmatprep.subr.bf16.mxu0 0
    %307 = vmatpush1.bf16.msra.mxu0 0
    %308 = vmatprep.subr.bf16.mxu0 0
    %309 = vmatpush1.bf16.msra.mxu0 0
    %310 = vmatprep.subr.bf16.mxu0 0
    %311 = vmatpush1.bf16.msra.mxu0 0
    %312 = vmatprep.subr.bf16.mxu0 0
    %313 = vmatpush1.bf16.msra.mxu0 0
    %314 = vmatprep.subr.bf16.mxu0 0
    %315 = vmatpush1.bf16.msra.mxu0 0
    %316 = vmatprep.subr.bf16.mxu0 0
    %317 = vmatpush1.bf16.msra.mxu0 0
    %318 = vmatprep.subr.bf16.mxu0 0
    %319 = vmatpush1.bf16.msra.mxu0 0
    %320 = vmatprep.subr.bf16.mxu0 0
    %321 = vmatpush1.bf16.msra.mxu0 0
    %322 = vmatprep.subr.bf16.mxu0 0
    %323 = vmatpush1.bf16.msra.mxu0 0
    %324 = vmatprep.subr.bf16.mxu0 0
    %325 = vmatpush1.bf16.msra.mxu0 0
    %326 = vmatprep.mubr.bf16.mxu0 0
    %327 = vmatmul.mubr.bf16.gmra.mrb[0].mxu0 %v292
    %v328 = vpop.f32.mrb[0].mxu0
    %v329 = vadd.f32 0.0, %v328
    %v330 = vpop.f32.mrb[0].mxu0
    %v331 = vpop.f32.mrb[0].mxu0
    %v332 = vpop.f32.mrb[0].mxu0
    %333 = vdwg.mxu0
    %v334 = vadd.f32 %v108, %v329
    %v335 = vxor.u32 %v334, 2147483648
    %v336 = vmul.f32 %v335, 1.442695
    %v337 = vpow.pop %v336
    %v338 = vadd.f32 %v337, 1.0
    %v339 = vrcp.pop %v338
    %v340 = vmul.f32 1.0, %v339
    %v341 = vadd.f32 %v329, %v183
    %343 = vrot.lane.b32.xlu0 %v341, 64
    %v344 = vpop.permute.xlu0 %343
    %v346 = vmul.f32 %v340, %v344
    %348 = vrot.lane.b32.xlu0 %v346, 64
    %v349 = vpop.permute.xlu0 %348
    %v351 = vadd.f32 %v108, %v349
    %v352 = vtanh.pop %v351
    %v353 = vsub.f32 1.0, %v340
    %355 = vrot.lane.b32.xlu0 %v352, 96
    %v356 = vpop.permute.xlu0 %355
    %v358 = vmul.f32 %v353, %v356
    %v360 = vrot.slane %v285, 4
    %v362 = vmul.f32 %v340, %v360
    %v363 = vadd.f32 %v358, %v362
    %v364 = vpack.c.bf16 %v363, %v363
    %366 = vrot.lane.b32.xlu0 %v364, 96
    %v367 = vpop.permute.xlu0 %366
    %v369 = vsel %vm131, %v367, 0
    %371 = vmatprep.subr.bf16.mxu0 0
    %372 = vmatpush1.bf16.msra.mxu0 %v127
    %373 = vmatprep.subr.bf16.mxu0 0
    %374 = vmatpush1.bf16.msra.mxu0 %v128
    %375 = vmatprep.subr.bf16.mxu0 0
    %376 = vmatpush1.bf16.msra.mxu0 0
    %377 = vmatprep.subr.bf16.mxu0 0
    %378 = vmatpush1.bf16.msra.mxu0 0
    %379 = vmatprep.subr.bf16.mxu0 0
    %380 = vmatpush1.bf16.msra.mxu0 0
    %381 = vmatprep.subr.bf16.mxu0 0
    %382 = vmatpush1.bf16.msra.mxu0 0
    %383 = vmatprep.subr.bf16.mxu0 0
    %384 = vmatpush1.bf16.msra.mxu0 0
    %385 = vmatprep.subr.bf16.mxu0 0
    %386 = vmatpush1.bf16.msra.mxu0 0
    %387 = vmatprep.subr.bf16.mxu0 0
    %388 = vmatpush1.bf16.msra.mxu0 0
    %389 = vmatprep.subr.bf16.mxu0 0
    %390 = vmatpush1.bf16.msra.mxu0 0
    %391 = vmatprep.subr.bf16.mxu0 0
    %392 = vmatpush1.bf16.msra.mxu0 0
    %393 = vmatprep.subr.bf16.mxu0 0
    %394 = vmatpush1.bf16.msra.mxu0 0
    %395 = vmatprep.subr.bf16.mxu0 0
    %396 = vmatpush1.bf16.msra.mxu0 0
    %397 = vmatprep.subr.bf16.mxu0 0
    %398 = vmatpush1.bf16.msra.mxu0 0
    %399 = vmatprep.subr.bf16.mxu0 0
    %400 = vmatpush1.bf16.msra.mxu0 0
    %401 = vmatprep.subr.bf16.mxu0 0
    %402 = vmatpush1.bf16.msra.mxu0 0
    %403 = vmatprep.mubr.bf16.mxu0 0
    %404 = vmatmul.mubr.bf16.gmra.mrb[0].mxu0 %v369
    %v405 = vpop.f32.mrb[0].mxu0
    %v406 = vadd.f32 0.0, %v405
    %v407 = vpop.f32.mrb[0].mxu0
    %v408 = vpop.f32.mrb[0].mxu0
    %v409 = vpop.f32.mrb[0].mxu0
    %410 = vdwg.mxu0
    %v412 = vrot.slane %v406, 4
    %v414 = vadd.f32 %v108, %v412
    %v415 = vxor.u32 %v414, 2147483648
    %v416 = vmul.f32 %v415, 1.442695
    %v417 = vpow.pop %v416
    %v418 = vadd.f32 %v417, 1.0
    %v419 = vrcp.pop %v418
    %v420 = vmul.f32 1.0, %v419
    %v421 = vadd.f32 %v406, %v183
    %v423 = vrot.slane %v421, 4
    %424 = vrot.lane.b32.xlu0 %v423, 64
    %v425 = vpop.permute.xlu0 %424
    %v427 = vmul.f32 %v420, %v425
    %429 = vrot.lane.b32.xlu0 %v427, 64
    %v430 = vpop.permute.xlu0 %429
    %v432 = vadd.f32 %v108, %v430
    %v433 = vtanh.pop %v432
    %v434 = vsub.f32 1.0, %v420
    %436 = vrot.lane.b32.xlu0 %v433, 96
    %v437 = vpop.permute.xlu0 %436
    %v439 = vmul.f32 %v434, %v437
    %v441 = vrot.slane %v363, 4
    %v443 = vmul.f32 %v420, %v441
    %v444 = vadd.f32 %v439, %v443
    %v445 = vpack.c.bf16 %v444, %v444
    %v447 = vrot.slane %v445, 2
    %448 = vrot.lane.b32.xlu0 %v447, 96
    %v449 = vpop.permute.xlu0 %448
    %v451 = vsel %vm131, %v449, 0
    %453 = vmatprep.subr.bf16.mxu0 0
    %454 = vmatpush1.bf16.msra.mxu0 %v127
    %455 = vmatprep.subr.bf16.mxu0 0
    %456 = vmatpush1.bf16.msra.mxu0 %v128
    %457 = vmatprep.subr.bf16.mxu0 0
    %458 = vmatpush1.bf16.msra.mxu0 0
    %459 = vmatprep.subr.bf16.mxu0 0
    %460 = vmatpush1.bf16.msra.mxu0 0
    %461 = vmatprep.subr.bf16.mxu0 0
    %462 = vmatpush1.bf16.msra.mxu0 0
    %463 = vmatprep.subr.bf16.mxu0 0
    %464 = vmatpush1.bf16.msra.mxu0 0
    %465 = vmatprep.subr.bf16.mxu0 0
    %466 = vmatpush1.bf16.msra.mxu0 0
    %467 = vmatprep.subr.bf16.mxu0 0
    %468 = vmatpush1.bf16.msra.mxu0 0
    %469 = vmatprep.subr.bf16.mxu0 0
    %470 = vmatpush1.bf16.msra.mxu0 0
    %471 = vmatprep.subr.bf16.mxu0 0
    %472 = vmatpush1.bf16.msra.mxu0 0
    %473 = vmatprep.subr.bf16.mxu0 0
    %474 = vmatpush1.bf16.msra.mxu0 0
    %475 = vmatprep.subr.bf16.mxu0 0
    %476 = vmatpush1.bf16.msra.mxu0 0
    %477 = vmatprep.subr.bf16.mxu0 0
    %478 = vmatpush1.bf16.msra.mxu0 0
    %479 = vmatprep.subr.bf16.mxu0 0
    %480 = vmatpush1.bf16.msra.mxu0 0
    %481 = vmatprep.subr.bf16.mxu0 0
    %482 = vmatpush1.bf16.msra.mxu0 0
    %483 = vmatprep.subr.bf16.mxu0 0
    %484 = vmatpush1.bf16.msra.mxu0 0
    %485 = vmatprep.mubr.bf16.mxu0 0
    %486 = vmatmul.mubr.bf16.gmra.mrb[0].mxu0 %v451
    %v487 = vpop.f32.mrb[0].mxu0
    %v488 = vadd.f32 0.0, %v487
    %v489 = vpop.f32.mrb[0].mxu0
    %v490 = vpop.f32.mrb[0].mxu0
    %v491 = vpop.f32.mrb[0].mxu0
    %492 = vdwg.mxu0
    %v493 = vadd.f32 %v113, %v488
    %v494 = vxor.u32 %v493, 2147483648
    %v495 = vmul.f32 %v494, 1.442695
    %v496 = vpow.pop %v495
    %v497 = vadd.f32 %v496, 1.0
    %v498 = vrcp.pop %v497
    %v499 = vmul.f32 1.0, %v498
    %v500 = vadd.f32 %v488, %v183
    %502 = vrot.lane.b32.xlu0 %v500, 64
    %v503 = vpop.permute.xlu0 %502
    %v505 = vmul.f32 %v499, %v503
    %507 = vrot.lane.b32.xlu0 %v505, 64
    %v508 = vpop.permute.xlu0 %507
    %v510 = vadd.f32 %v113, %v508
    %v511 = vtanh.pop %v510
    %v512 = vsub.f32 1.0, %v499
    %514 = vrot.lane.b32.xlu0 %v511, 96
    %v515 = vpop.permute.xlu0 %514
    %v517 = vmul.f32 %v512, %v515
    %v519 = vrot.slane %v444, 4
    %v521 = vmul.f32 %v499, %v519
    %v522 = vadd.f32 %v517, %v521
    %v523 = vpack.c.bf16 %v522, %v522
    %525 = vrot.lane.b32.xlu0 %v523, 96
    %v526 = vpop.permute.xlu0 %525
    %v528 = vsel %vm131, %v526, 0
    %530 = vmatprep.subr.bf16.mxu0 0
    %531 = vmatpush1.bf16.msra.mxu0 %v127
    %532 = vmatprep.subr.bf16.mxu0 0
    %533 = vmatpush1.bf16.msra.mxu0 %v128
    %534 = vmatprep.subr.bf16.mxu0 0
    %535 = vmatpush1.bf16.msra.mxu0 0
    %536 = vmatprep.subr.bf16.mxu0 0
    %537 = vmatpush1.bf16.msra.mxu0 0
    %538 = vmatprep.subr.bf16.mxu0 0
    %539 = vmatpush1.bf16.msra.mxu0 0
    %540 = vmatprep.subr.bf16.mxu0 0
    %541 = vmatpush1.bf16.msra.mxu0 0
    %542 = vmatprep.subr.bf16.mxu0 0
    %543 = vmatpush1.bf16.msra.mxu0 0
    %544 = vmatprep.subr.bf16.mxu0 0
    %545 = vmatpush1.bf16.msra.mxu0 0
    %546 = vmatprep.subr.bf16.mxu0 0
    %547 = vmatpush1.bf16.msra.mxu0 0
    %548 = vmatprep.subr.bf16.mxu0 0
    %549 = vmatpush1.bf16.msra.mxu0 0
    %550 = vmatprep.subr.bf16.mxu0 0
    %551 = vmatpush1.bf16.msra.mxu0 0
    %552 = vmatprep.subr.bf16.mxu0 0
    %553 = vmatpush1.bf16.msra.mxu0 0
    %554 = vmatprep.subr.bf16.mxu0 0
    %555 = vmatpush1.bf16.msra.mxu0 0
    %556 = vmatprep.subr.bf16.mxu0 0
    %557 = vmatpush1.bf16.msra.mxu0 0
    %558 = vmatprep.subr.bf16.mxu0 0
    %559 = vmatpush1.bf16.msra.mxu0 0
    %560 = vmatprep.subr.bf16.mxu0 0
    %561 = vmatpush1.bf16.msra.mxu0 0
    %562 = vmatprep.mubr.bf16.mxu0 0
    %563 = vmatmul.mubr.bf16.gmra.mrb[0].mxu0 %v528
    %v564 = vpop.f32.mrb[0].mxu0
    %v565 = vadd.f32 0.0, %v564
    %v566 = vpop.f32.mrb[0].mxu0
    %v567 = vpop.f32.mrb[0].mxu0
    %v568 = vpop.f32.mrb[0].mxu0
    %569 = vdwg.mxu0
    %v571 = vrot.slane %v565, 4
    %v573 = vadd.f32 %v113, %v571
    %v574 = vxor.u32 %v573, 2147483648
    %v575 = vmul.f32 %v574, 1.442695
    %v576 = vpow.pop %v575
    %v577 = vadd.f32 %v576, 1.0
    %v578 = vrcp.pop %v577
    %v579 = vmul.f32 1.0, %v578
    %v580 = vadd.f32 %v565, %v183
    %v582 = vrot.slane %v580, 4
    %583 = vrot.lane.b32.xlu0 %v582, 64
    %v584 = vpop.permute.xlu0 %583
    %v586 = vmul.f32 %v579, %v584
    %588 = vrot.lane.b32.xlu0 %v586, 64
    %v589 = vpop.permute.xlu0 %588
    %v591 = vadd.f32 %v113, %v589
    %v592 = vtanh.pop %v591
    %v593 = vsub.f32 1.0, %v579
    %595 = vrot.lane.b32.xlu0 %v592, 96
    %v596 = vpop.permute.xlu0 %595
    %v598 = vmul.f32 %v593, %v596
    %v600 = vrot.slane %v522, 4
    %v602 = vmul.f32 %v579, %v600
    %v603 = vadd.f32 %v598, %v602
    %v604 = vpack.c.bf16 %v603, %v603
    %v606 = vrot.slane %v604, 2
    %607 = vrot.lane.b32.xlu0 %v606, 96
    %v608 = vpop.permute.xlu0 %607
    %v610 = vsel %vm131, %v608, 0
    %612 = vmatprep.subr.bf16.mxu0 0
    %613 = vmatpush1.bf16.msra.mxu0 %v127
    %614 = vmatprep.subr.bf16.mxu0 0
    %615 = vmatpush1.bf16.msra.mxu0 %v128
    %616 = vmatprep.subr.bf16.mxu0 0
    %617 = vmatpush1.bf16.msra.mxu0 0
    %618 = vmatprep.subr.bf16.mxu0 0
    %619 = vmatpush1.bf16.msra.mxu0 0
    %620 = vmatprep.subr.bf16.mxu0 0
    %621 = vmatpush1.bf16.msra.mxu0 0
    %622 = vmatprep.subr.bf16.mxu0 0
    %623 = vmatpush1.bf16.msra.mxu0 0
    %624 = vmatprep.subr.bf16.mxu0 0
    %625 = vmatpush1.bf16.msra.mxu0 0
    %626 = vmatprep.subr.bf16.mxu0 0
    %627 = vmatpush1.bf16.msra.mxu0 0
    %628 = vmatprep.subr.bf16.mxu0 0
    %629 = vmatpush1.bf16.msra.mxu0 0
    %630 = vmatprep.subr.bf16.mxu0 0
    %631 = vmatpush1.bf16.msra.mxu0 0
    %632 = vmatprep.subr.bf16.mxu0 0
    %633 = vmatpush1.bf16.msra.mxu0 0
    %634 = vmatprep.subr.bf16.mxu0 0
    %635 = vmatpush1.bf16.msra.mxu0 0
    %636 = vmatprep.subr.bf16.mxu0 0
    %637 = vmatpush1.bf16.msra.mxu0 0
    %638 = vmatprep.subr.bf16.mxu0 0
    %639 = vmatpush1.bf16.msra.mxu0 0
    %640 = vmatprep.subr.bf16.mxu0 0
    %641 = vmatpush1.bf16.msra.mxu0 0
    %642 = vmatprep.subr.bf16.mxu0 0
    %643 = vmatpush1.bf16.msra.mxu0 0
    %644 = vmatprep.mubr.bf16.mxu0 0
    %645 = vmatmul.mubr.bf16.gmra.mrb[0].mxu0 %v610
    %v646 = vpop.f32.mrb[0].mxu0
    %v647 = vadd.f32 0.0, %v646
    %v648 = vpop.f32.mrb[0].mxu0
    %v649 = vpop.f32.mrb[0].mxu0
    %v650 = vpop.f32.mrb[0].mxu0
    %651 = vdwg.mxu0
    %v652 = vadd.f32 %v116, %v647
    %v653 = vxor.u32 %v652, 2147483648
    %v654 = vmul.f32 %v653, 1.442695
    %v655 = vpow.pop %v654
    %v656 = vadd.f32 %v655, 1.0
    %v657 = vrcp.pop %v656
    %v658 = vmul.f32 1.0, %v657
    %v659 = vadd.f32 %v647, %v183
    %661 = vrot.lane.b32.xlu0 %v659, 64
    %v662 = vpop.permute.xlu0 %661
    %v664 = vmul.f32 %v658, %v662
    %666 = vrot.lane.b32.xlu0 %v664, 64
    %v667 = vpop.permute.xlu0 %666
    %v669 = vadd.f32 %v116, %v667
    %v670 = vtanh.pop %v669
    %v671 = vsub.f32 1.0, %v658
    %673 = vrot.lane.b32.xlu0 %v670, 96
    %v674 = vpop.permute.xlu0 %673
    %v676 = vmul.f32 %v671, %v674
    %v678 = vrot.slane %v603, 4
    %v680 = vmul.f32 %v658, %v678
    %v681 = vadd.f32 %v676, %v680
    %v682 = vpack.c.bf16 %v681, %v681
    %684 = vrot.lane.b32.xlu0 %v682, 96
    %v685 = vpop.permute.xlu0 %684
    %v687 = vsel %vm131, %v685, 0
    %689 = vmatprep.subr.bf16.mxu0 0
    %690 = vmatpush1.bf16.msra.mxu0 %v127
    %691 = vmatprep.subr.bf16.mxu0 0
    %692 = vmatpush1.bf16.msra.mxu0 %v128
    %693 = vmatprep.subr.bf16.mxu0 0
    %694 = vmatpush1.bf16.msra.mxu0 0
    %695 = vmatprep.subr.bf16.mxu0 0
    %696 = vmatpush1.bf16.msra.mxu0 0
    %697 = vmatprep.subr.bf16.mxu0 0
    %698 = vmatpush1.bf16.msra.mxu0 0
    %699 = vmatprep.subr.bf16.mxu0 0
    %700 = vmatpush1.bf16.msra.mxu0 0
    %701 = vmatprep.subr.bf16.mxu0 0
    %702 = vmatpush1.bf16.msra.mxu0 0
    %703 = vmatprep.subr.bf16.mxu0 0
    %704 = vmatpush1.bf16.msra.mxu0 0
    %705 = vmatprep.subr.bf16.mxu0 0
    %706 = vmatpush1.bf16.msra.mxu0 0
    %707 = vmatprep.subr.bf16.mxu0 0
    %708 = vmatpush1.bf16.msra.mxu0 0
    %709 = vmatprep.subr.bf16.mxu0 0
    %710 = vmatpush1.bf16.msra.mxu0 0
    %711 = vmatprep.subr.bf16.mxu0 0
    %712 = vmatpush1.bf16.msra.mxu0 0
    %713 = vmatprep.subr.bf16.mxu0 0
    %714 = vmatpush1.bf16.msra.mxu0 0
    %715 = vmatprep.subr.bf16.mxu0 0
    %716 = vmatpush1.bf16.msra.mxu0 0
    %717 = vmatprep.subr.bf16.mxu0 0
    %718 = vmatpush1.bf16.msra.mxu0 0
    %719 = vmatprep.subr.bf16.mxu0 0
    %720 = vmatpush1.bf16.msra.mxu0 0
    %721 = vmatprep.mubr.bf16.mxu0 0
    %722 = vmatmul.mubr.bf16.gmra.mrb[0].mxu0 %v687
    %v723 = vpop.f32.mrb[0].mxu0
    %v724 = vadd.f32 0.0, %v723
    %v725 = vpop.f32.mrb[0].mxu0
    %v726 = vpop.f32.mrb[0].mxu0
    %v727 = vpop.f32.mrb[0].mxu0
    %728 = vdwg.mxu0
    %v730 = vrot.slane %v724, 4
    %v732 = vadd.f32 %v116, %v730
    %v733 = vxor.u32 %v732, 2147483648
    %v734 = vmul.f32 %v733, 1.442695
    %v735 = vpow.pop %v734
    %v736 = vadd.f32 %v735, 1.0
    %v737 = vrcp.pop %v736
    %v738 = vmul.f32 1.0, %v737
    %v739 = vadd.f32 %v724, %v183
    %v741 = vrot.slane %v739, 4
    %742 = vrot.lane.b32.xlu0 %v741, 64
    %v743 = vpop.permute.xlu0 %742
    %v745 = vmul.f32 %v738, %v743
    %747 = vrot.lane.b32.xlu0 %v745, 64
    %v748 = vpop.permute.xlu0 %747
    %v750 = vadd.f32 %v116, %v748
    %v751 = vtanh.pop %v750
    %v752 = vsub.f32 1.0, %v738
    %754 = vrot.lane.b32.xlu0 %v751, 96
    %v755 = vpop.permute.xlu0 %754
    %v757 = vmul.f32 %v752, %v755
    %v759 = vrot.slane %v681, 4
    %v761 = vmul.f32 %v738, %v759
    %v762 = vadd.f32 %v757, %v761
    %v764 = vrot.slane %v762, 4
    %765 = vrot.lane.b32.xlu0 %v204, 96
    %v766 = vpop.permute.xlu0 %765
    %767 = vrot.lane.b32.xlu0 %v360, 96
    %v768 = vpop.permute.xlu0 %767
    %769 = vrot.lane.b32.xlu0 %v363, 96
    %v770 = vpop.permute.xlu0 %769
    %771 = vrot.lane.b32.xlu0 %v519, 96
    %v772 = vpop.permute.xlu0 %771
    %773 = vrot.lane.b32.xlu0 %v522, 96
    %v774 = vpop.permute.xlu0 %773
    %775 = vrot.lane.b32.xlu0 %v678, 96
    %v776 = vpop.permute.xlu0 %775
    %777 = vrot.lane.b32.xlu0 %v681, 96
    %v778 = vpop.permute.xlu0 %777
    %779 = vrot.lane.b32.xlu0 %v764, 96
    %v780 = vpop.permute.xlu0 %779
    %vm789 = vcmask 257024
    %790 = vst.msk [vmem:[%s5] sm:$0xf] %vm789, %v766
    %791 = vst.msk [vmem:[%s5 + $0x4] sm:$0xf] %vm789, %v768
    %792 = vst.msk [vmem:[%s5 + $0x8] sm:$0xf] %vm789, %v770
    %793 = vst.msk [vmem:[%s5 + $0xc] sm:$0xf] %vm789, %v772
    %794 = vst.msk [vmem:[%s5 + $0x10] sm:$0xf] %vm789, %v774
    %795 = vst.msk [vmem:[%s5 + $0x14] sm:$0xf] %vm789, %v776
    %796 = vst.msk [vmem:[%s5 + $0x18] sm:$0xf] %vm789, %v778
    %797 = vst.msk [vmem:[%s5 + $0x1c] sm:$0xf] %vm789, %v780
    %798 = vrot.lane.b32.xlu0 %v762, 96
    %v799 = vpop.permute.xlu0 %798
    %vm801 = vcmask 261124
    %802 = vst.msk [vmem:[#allocation2 - $0x4] sm:$0xf0] %vm801, %v799
    // Predicated region
    $region22: #{encoder_rnn_forward.1} parent=1 // pred_check
      _
    $region23: #{encoder_rnn_forward.1} parent=1 // pred_check_branch
      %804 = sbr.rel (0) target = $region25
    $region24: #{encoder_rnn_forward.1} parent=1 // pred_region
      _
    $region25: #{encoder_rnn_forward.1} parent=1 // pred_fallthru
      _
    // Predicated region
    $region26: #{encoder_rnn_forward.1} parent=1 // pred_check
      _
    $region27: #{encoder_rnn_forward.1} parent=1 // pred_check_branch
      %806 = sbr.rel (0) target = $region29
    $region28: #{encoder_rnn_forward.1} parent=1 // pred_region
      %s808 = ssub.s32 64, 64
      %809 = vsyncadd [#allocation3], %s808
      %s811 = sshll.u32 [#allocation2], 4
      %s812 = int_to_ptr.vmem [resolvable:$true] %s811
      %814 = dma.vmem_to_hbm [thread:$0]  %s812, 64, %s6, [#allocation3]
    $region29: #{encoder_rnn_forward.1} parent=1 // pred_fallthru
      _
    // Predicated region
    $region30: #{encoder_rnn_forward.1} parent=1 // pred_check
      _
    $region31: #{encoder_rnn_forward.1} parent=1 // pred_check_branch
      %816 = sbr.rel (0) target = $region33
    $region32: #{encoder_rnn_forward.1} parent=1 // pred_region
      _
    $region33: #{encoder_rnn_forward.1} parent=1 // pred_fallthru
      _
    // Predicated region
    $region34: #{encoder_rnn_forward.1} parent=1 // pred_check
      _
    $region35: #{encoder_rnn_forward.1} parent=1 // pred_check_branch
      %818 = sbr.rel (0) target = $region37
    $region36: #{encoder_rnn_forward.1} parent=1 // pred_region
      %819 = dma.done [#allocation3], 64
    $region37: #{encoder_rnn_forward.1} parent=1 // pred_fallthru
      _
    %820 = vsyncpa [#allocation3], 1

</llo_original>
